<compile_context>
chip_gen: v6e
topology: v6e:2x2x1
jax: 0.10.0
libtpu: 0.0.40
codegen_flags: <defaults>
</compile_context>

<pallas_src>
import jax
import jax.numpy as jnp
from jax.experimental import pallas as pl
from jax.experimental.pallas import tpu as pltpu


def mal_agent1_kernel(r0_ref, am1_ref, a_ref):
    # r0_ref / am1_ref / a_ref: (1, TB) lane-dense VMEM tiles.
    # a = requests[:, 0] * (alpha - 1)  -> a single fully-packed VPU multiply.
    a_ref[...] = r0_ref[...] * am1_ref[...]


def mal_agent1_sample(requests: jax.Array, alpha: jax.Array) -> jax.Array:
    """Pallas TPU implementation of mal_agent1.sample()'s action computation.

    requests: (B, S) float32
    alpha:    (B,)   float32
    returns a: (B,)  float32   where a = requests[:, 0] * alpha - requests[:, 0]
    """
    B, S = requests.shape
    dtype = requests.dtype

    # Slice the single used column in the wrapper so the kernel never DMAs
    # the other S-1 columns. Fold the two-op form into one multiply.
    r0 = requests[:, 0].reshape(1, B)                              # (1, B)
    am1 = (alpha.astype(dtype) - jnp.asarray(1.0, dtype)).reshape(1, B)

    # Lane-dense layout: B on the 128-lane axis, padded up to a tile multiple.
    LANE = 128
    b128 = ((B + LANE - 1) // LANE) * LANE
    TB = min(b128, 512)                    # tile size (multiple of 128)
    B_pad = ((b128 + TB - 1) // TB) * TB   # TB divides B_pad
    if B_pad != B:
        pad = B_pad - B
        r0 = jnp.pad(r0, ((0, 0), (0, pad)))
        am1 = jnp.pad(am1, ((0, 0), (0, pad)))

    grid = (B_pad // TB,)

    a2d = pl.pallas_call(
        mal_agent1_kernel,
        out_shape=jax.ShapeDtypeStruct((1, B_pad), dtype),
        grid_spec=pltpu.PrefetchScalarGridSpec(
            num_scalar_prefetch=0,
            grid=grid,
            in_specs=[
                pl.BlockSpec((1, TB), lambda i: (0, i)),
                pl.BlockSpec((1, TB), lambda i: (0, i)),
            ],
            out_specs=pl.BlockSpec((1, TB), lambda i: (0, i)),
        ),
        compiler_params=pltpu.CompilerParams(
            dimension_semantics=("parallel",),
        ),
    )(r0, am1)

    return a2d[0, :B]


if __name__ == "__main__":
    # Small shapes consistent with the module: batch_size=8, request length=16.
    B, S = 8, 16
    key = jax.random.PRNGKey(0)
    k_req, k_alpha = jax.random.split(key)

    requests = jax.random.normal(k_req, (B, S), dtype=jnp.float32)
    # Deterministic stand-in for np.random.uniform(low=0.1, high=0.601, size=batch_size)
    alpha = jax.random.uniform(k_alpha, (B,), dtype=jnp.float32,
                               minval=0.1, maxval=0.601)

    a = mal_agent1_sample(requests, alpha)
    a = jax.block_until_ready(a)

    # Reference (plain JAX) check of the original two-op semantics.
    ref = requests[:, 0] * alpha - requests[:, 0]
    assert a.shape == (B,)
    assert jnp.allclose(a, ref, atol=1e-6, rtol=1e-6)

    print("KERNEL_OK")
</pallas_src>

<mosaic_0001>
module attributes {stable_mosaic.version = 11 : i64} {
  func.func @mal_agent1_kernel(%arg0: i32, %arg1: memref<1x128xf32, #tpu.memory_space<vmem>>, %arg2: memref<1x128xf32, #tpu.memory_space<vmem>>, %arg3: memref<1x128xf32, #tpu.memory_space<vmem>>) attributes {dimension_semantics = [#tpu.dimension_semantics<parallel>], iteration_bounds = array<i64: 1>, scalar_prefetch = 0 : i64, scratch_operands = 0 : i64, tpu.core_type = #tpu.core_type<tc>, window_params = [{transform_indices = @transform_0, window_bounds = array<i64: 1, 128>}, {transform_indices = @transform_1, window_bounds = array<i64: 1, 128>}, {transform_indices = @transform_2, window_bounds = array<i64: 1, 128>}]} {
    %c0 = arith.constant 0 : index
    %c0_0 = arith.constant 0 : index
    %0 = vector.load %arg1[%c0, %c0_0] : memref<1x128xf32, #tpu.memory_space<vmem>>, vector<1x128xf32>
    %c0_1 = arith.constant 0 : index
    %c0_2 = arith.constant 0 : index
    %1 = vector.load %arg2[%c0_1, %c0_2] : memref<1x128xf32, #tpu.memory_space<vmem>>, vector<1x128xf32>
    %2 = arith.mulf %0, %1 : vector<1x128xf32>
    %c0_3 = arith.constant 0 : index
    %c0_4 = arith.constant 0 : index
    %3 = vector.load %arg3[%c0_3, %c0_4] : memref<1x128xf32, #tpu.memory_space<vmem>>, vector<1x128xf32>
    tpu.vector_store %arg3[%c0_3, %c0_4], %2 {strides = array<i32>} : memref<1x128xf32, #tpu.memory_space<vmem>>, vector<1x128xf32>,
    return
  }
  func.func @transform_0(%arg0: i32) -> (i32, i32) {
    %c0_i32 = arith.constant 0 : i32
    %c0_i32_0 = arith.constant 0 : i32
    return %c0_i32, %arg0 : i32, i32
  }
  func.func @transform_1(%arg0: i32) -> (i32, i32) {
    %c0_i32 = arith.constant 0 : i32
    %c0_i32_0 = arith.constant 0 : i32
    return %c0_i32, %arg0 : i32, i32
  }
  func.func @transform_2(%arg0: i32) -> (i32, i32) {
    %c0_i32 = arith.constant 0 : i32
    %c0_i32_0 = arith.constant 0 : i32
    return %c0_i32, %arg0 : i32, i32
  }
}

</mosaic_0001>

<llo_original>
// kernel: tpu_custom_call.1
$region0: #{tpu_custom_call.1}
  #allocation0 [shape = 'u32[]', space=smem, size = 0x4, offset = 0x4, fixed_abs, tag = 'smem constant byte address 0x4 - core index']
  #allocation1 [shape = 'u32[144,128]{1,0:T(1,128)}', space=vmem, size = 0x12000, scoped, tag = 'internal scratch']
  %s0 = inlined_call_operand.hbm [shape: f32[1,128], index: 0, kind: input, shape index: {}]
  %s1 = inlined_call_operand.vmem [shape: f32[1,128], index: 1, kind: input, shape index: {}]
  %s2 = inlined_call_operand.hbm [shape: f32[1,128], index: 2, kind: output, shape index: {}]
  %s3 = sld [smem:[#allocation0]]
  $region22: #{tpu_custom_call.1} parent=0
    _
  %s5 = ssub.s32 1, %s3
  %s6 = scalar_select 0, %s5, %s3
  $region1: #{tpu_custom_call.1} parent=0
    #allocation2 [shape = 'u8[512]{0}', space=vmem, size = 0x400, scoped, tag = 'input window, operand 0, single buffered']
    #allocation3 [shape = 's32[1]{0}', space=sflag, size = 0x4, scoped, tag = 'scoped memory for tpu_custom_call.1']
    #allocation4 [shape = 's32[1]{0}', space=sflag, size = 0x4, scoped, tag = 'scoped memory for tpu_custom_call.1']
    #allocation5 [shape = 'u8[512]{0}', space=vmem, size = 0x400, scoped, tag = 'output window, operand 0, single buffered']
    %7 = vsyncpa [#allocation3], 0
    %8 = vsyncpa [#allocation4], 0
    // Predicated region
    $region2: #{tpu_custom_call.1} parent=1 // pred_check
      _
    $region3: #{tpu_custom_call.1} parent=1 // pred_check_branch
      %10 = sbr.rel (0) target = $region5
    $region4: #{tpu_custom_call.1} parent=1 // pred_region
      %s12 = ssub.s32 16, 16
      %13 = vsyncadd [#allocation3], %s12
      %s15 = sshll.u32 [#allocation2], 4
      %s16 = int_to_ptr.vmem [resolvable:$true] %s15
      %18 = dma.hbm_to_vmem [thread:$0]  %s0, 16, %s16, [#allocation3]
    $region5: #{tpu_custom_call.1} parent=1 // pred_fallthru
      _
    // Predicated region
    $region6: #{tpu_custom_call.1} parent=1 // pred_check
      _
    $region7: #{tpu_custom_call.1} parent=1 // pred_check_branch
      %20 = sbr.rel (0) target = $region9
    $region8: #{tpu_custom_call.1} parent=1 // pred_region
      _
    $region9: #{tpu_custom_call.1} parent=1 // pred_fallthru
      _
    // Predicated region
    $region10: #{tpu_custom_call.1} parent=1 // pred_check
      _
    $region11: #{tpu_custom_call.1} parent=1 // pred_check_branch
      %22 = sbr.rel (0) target = $region13
    $region12: #{tpu_custom_call.1} parent=1 // pred_region
      %23 = dma.done [#allocation3], 16
    $region13: #{tpu_custom_call.1} parent=1 // pred_fallthru
      _
    %v24 = vld [vmem:[#allocation2] sm:$0x1]
    %v25 = vld [vmem:[%s1] sm:$0x1]
    %v26 = vmul.f32 %v24, %v25
    %27 = vst [vmem:[#allocation5] sm:$0x1] %v26
    // Predicated region
    $region14: #{tpu_custom_call.1} parent=1 // pred_check
      _
    $region15: #{tpu_custom_call.1} parent=1 // pred_check_branch
      %29 = sbr.rel (0) target = $region17
    $region16: #{tpu_custom_call.1} parent=1 // pred_region
      %s31 = ssub.s32 16, 16
      %32 = vsyncadd [#allocation4], %s31
      %s34 = sshll.u32 [#allocation5], 4
      %s35 = int_to_ptr.vmem [resolvable:$true] %s34
      %37 = dma.vmem_to_hbm [thread:$0]  %s35, 16, %s2, [#allocation4]
    $region17: #{tpu_custom_call.1} parent=1 // pred_fallthru
      _
    // Predicated region
    $region18: #{tpu_custom_call.1} parent=1 // pred_check
      _
    $region19: #{tpu_custom_call.1} parent=1 // pred_check_branch
      %39 = sbr.rel (0) target = $region21
    $region20: #{tpu_custom_call.1} parent=1 // pred_region
      %40 = dma.done [#allocation4], 16
    $region21: #{tpu_custom_call.1} parent=1 // pred_fallthru
      _
    %41 = vsyncpa [#allocation3], 1
    %42 = vsyncpa [#allocation4], 1

</llo_original>
